<compile_context>
chip_gen: v7x
topology: tpu7x:2x2x1
jax: 0.10.0
libtpu: 0.0.40
codegen_flags: <defaults>
</compile_context>

<pallas_src>
import math
from functools import partial

import jax
import jax.numpy as jnp
from jax.experimental import pallas as pl
from jax.experimental.pallas import tpu as pltpu


def _round_up(x: int, m: int) -> int:
    return ((x + m - 1) // m) * m


def _choose_tm(mpad: int, base: int, target: int = 512) -> int:
    """Largest multiple of `base` that divides `mpad`, capped near `target`.

    If a single tile would cover all of mpad, split it in two so both v7x
    TensorCores get work (dimension_semantics=("parallel",))."""
    tm = base
    t = base
    cap = max(base, target)
    while t <= min(mpad, cap):
        if mpad % t == 0:
            tm = t
        t += base
    if tm == mpad and mpad % (2 * base) == 0:
        tm = mpad // 2
    return tm


# ---------------------------------------------------------------------------
# Kernel: flat patch-embedding matmul  (TM, K) @ (K, D) + (bias + pos_patch)
# ---------------------------------------------------------------------------
def patch_embed_kernel(reps, p_ref, w_ref, bp_ref, o_ref):
    # p_ref : (TM, K) bf16      w_ref : (K, D) bf16  (VMEM-resident)
    # bp_ref: (NP, D) f32  = conv bias + pos_embedding[1:]  (VMEM-resident)
    # o_ref : (TM, D) f32
    acc = jnp.dot(p_ref[...], w_ref[...], preferred_element_type=jnp.float32)
    bp = bp_ref[...]
    if reps > 1:                      # TM is a multiple of NP; tiles are
        bp = jnp.tile(bp, (reps, 1))  # batch-aligned, so pos just repeats.
    o_ref[...] = acc + bp


# ---------------------------------------------------------------------------
# One-time parameter preparation (hoisted out of the per-call hot path)
# ---------------------------------------------------------------------------
def prepare_vit_params(conv_w, conv_b, cls_token, pos_embedding):
    D, C, P, _ = conv_w.shape
    K = C * P * P
    w_kd = jnp.asarray(conv_w.reshape(D, K).T, dtype=jnp.bfloat16)      # (K, D)
    pos = pos_embedding.reshape(-1, D).astype(jnp.float32)              # (NP+1, D)
    bias_pos = conv_b.reshape(1, D).astype(jnp.float32) + pos[1:]       # (NP, D)
    cls_pos = cls_token.reshape(1, D).astype(jnp.float32) + pos[0:1]    # (1, D)
    return w_kd, bias_pos, cls_pos


# ---------------------------------------------------------------------------
# Forward wrapper
# ---------------------------------------------------------------------------
@partial(jax.jit, static_argnums=(4,))
def vit_input_layer(x, w_kd, bias_pos, cls_pos, num_patch_row):
    """x: (B, C, H, W) float32, NCHW like the PyTorch module."""
    B, C, H, W = x.shape
    P = H // num_patch_row
    NP = num_patch_row * num_patch_row
    K, D = w_kd.shape
    M = B * NP

    # --- glue: patchify (pure reshape/transpose, zero compute) -------------
    # (B, C, nh, P, nw, P) -> (B, nh, nw, C, P, P) -> (M=B*NP, K=C*P*P)
    xp = x.reshape(B, C, num_patch_row, P, num_patch_row, P)
    xp = jnp.transpose(xp, (0, 2, 4, 1, 3, 5))
    patches = xp.reshape(M, K).astype(jnp.bfloat16)   # bf16 MXU operands

    # Tile size: multiple of lcm(8, NP)  -> satisfies the (8,128) sublane rule
    # AND keeps every tile batch-aligned so the (NP, D) pos block lines up.
    base = (8 * NP) // math.gcd(8, NP)
    Mpad = _round_up(M, base)
    if Mpad != M:
        patches = jnp.pad(patches, ((0, Mpad - M), (0, 0)))
    TM = _choose_tm(Mpad, base)
    grid_m = Mpad // TM

    patch_spec_kwargs = {}
    if grid_m >= 3:                          # deeper pipelining only pays off
        patch_spec_kwargs["pipeline_mode"] = pl.Buffered(3)

    cost = pl.CostEstimate(
        flops=2 * Mpad * K * D,
        transcendentals=0,
        bytes_accessed=Mpad * K * 2 + K * D * 2 + NP * D * 4 + Mpad * D * 4,
    )

    emb_flat = pl.pallas_call(
        partial(patch_embed_kernel, TM // NP),
        out_shape=jax.ShapeDtypeStruct((Mpad, D), jnp.float32),
        grid=(grid_m,),
        in_specs=[
            pl.BlockSpec((TM, K), lambda i: (i, 0), **patch_spec_kwargs),
            pl.BlockSpec((K, D), lambda i: (0, 0)),    # VMEM-resident weights
            pl.BlockSpec((NP, D), lambda i: (0, 0)),   # VMEM-resident bias+pos
        ],
        out_specs=pl.BlockSpec((TM, D), lambda i: (i, 0)),
        compiler_params=pltpu.CompilerParams(
            dimension_semantics=("parallel",)),        # megacore-shardable
        cost_estimate=cost,
    )(patches, w_kd, bias_pos)

    emb = emb_flat if Mpad == M else emb_flat[:M]
    emb = emb.reshape(B, NP, D)

    # Single cls row (+ its pos) handled by XLA: one tiny broadcast + concat.
    cls_row = jnp.broadcast_to(cls_pos.reshape(1, 1, D), (B, 1, D))
    return jnp.concatenate([cls_row, emb], axis=1)


# ---------------------------------------------------------------------------
# Reference (plain JAX, f32) for a sanity check
# ---------------------------------------------------------------------------
def vit_input_ref(x, conv_w, conv_b, cls_token, pos_embedding, num_patch_row):
    B, C, H, W = x.shape
    P = H // num_patch_row
    NP = num_patch_row * num_patch_row
    D = conv_w.shape[0]
    K = C * P * P
    xp = x.reshape(B, C, num_patch_row, P, num_patch_row, P)
    xp = jnp.transpose(xp, (0, 2, 4, 1, 3, 5)).reshape(B, NP, K)
    w2d = conv_w.reshape(D, K).T
    emb = jnp.einsum("bpk,kd->bpd", xp, w2d,
                     precision=jax.lax.Precision.HIGHEST) + conv_b[None, None]
    cls = jnp.broadcast_to(cls_token.reshape(1, 1, D), (B, 1, D))
    z0 = jnp.concatenate([cls, emb], axis=1)
    return z0 + pos_embedding.reshape(1, NP + 1, D)


# ---------------------------------------------------------------------------
if __name__ == "__main__":
    # Module defaults: num_patch_row=2, in_channels=3, emb_dim=384, img_size=32
    num_patch_row = 2
    in_channels = 3
    emb_dim = 384
    img_size = 32
    batch_size = 2
    patch_size = img_size // num_patch_row          # 16
    num_patch = num_patch_row * num_patch_row       # 4
    K = in_channels * patch_size * patch_size       # 768

    key = jax.random.PRNGKey(0)
    kx, kw, kb, kc, kp = jax.random.split(key, 5)

    x = jax.random.normal(kx, (batch_size, in_channels, img_size, img_size),
                          dtype=jnp.float32)
    conv_w = jax.random.normal(kw, (emb_dim, in_channels, patch_size, patch_size),
                               dtype=jnp.float32) * (1.0 / jnp.sqrt(K))
    conv_b = jax.random.normal(kb, (emb_dim,), dtype=jnp.float32) * 0.02
    cls_token = jax.random.normal(kc, (1, 1, emb_dim), dtype=jnp.float32)
    pos_embedding = jax.random.normal(kp, (1, num_patch + 1, emb_dim),
                                      dtype=jnp.float32)

    # One-time parameter transform (outside the per-call hot path).
    w_kd, bias_pos, cls_pos = prepare_vit_params(conv_w, conv_b, cls_token,
                                                 pos_embedding)

    z0 = vit_input_layer(x, w_kd, bias_pos, cls_pos, num_patch_row)
    z0 = jax.block_until_ready(z0)

    z_ref = vit_input_ref(x, conv_w, conv_b, cls_token, pos_embedding,
                          num_patch_row)
    assert z0.shape == (batch_size, num_patch + 1, emb_dim)
    # bf16 MXU operands -> loose tolerance vs. f32 HIGHEST-precision reference.
    max_err = float(jnp.max(jnp.abs(z0 - z_ref)))
    assert jnp.allclose(z0, z_ref, rtol=5e-2, atol=5e-2), max_err

    print("KERNEL_OK")
</pallas_src>

<mosaic_0001>
module attributes {stable_mosaic.version = 11 : i64} {
  func.func @patch_embed_kernel(%arg0: i32, %arg1: memref<8x768xbf16, #tpu.memory_space<vmem>>, %arg2: memref<768x384xbf16, #tpu.memory_space<vmem>>, %arg3: memref<4x384xf32, #tpu.memory_space<vmem>>, %arg4: memref<8x384xf32, #tpu.memory_space<vmem>>) attributes {dimension_semantics = [#tpu.dimension_semantics<parallel>], iteration_bounds = array<i64: 1>, scalar_prefetch = 0 : i64, scratch_operands = 0 : i64, tpu.core_type = #tpu.core_type<tc>, window_params = [{transform_indices = @transform_0, window_bounds = array<i64: 8, 768>}, {pipeline_mode = #tpu.pipeline_mode<synchronous>, transform_indices = @transform_1, window_bounds = array<i64: 768, 384>}, {pipeline_mode = #tpu.pipeline_mode<synchronous>, transform_indices = @transform_2, window_bounds = array<i64: 4, 384>}, {transform_indices = @transform_3, window_bounds = array<i64: 8, 384>}]} {
    %c0 = arith.constant 0 : index
    %c0_0 = arith.constant 0 : index
    %0 = vector.load %arg1[%c0, %c0_0] : memref<8x768xbf16, #tpu.memory_space<vmem>>, vector<8x768xbf16>
    %c0_1 = arith.constant 0 : index
    %c0_2 = arith.constant 0 : index
    %1 = vector.load %arg2[%c0_1, %c0_2] : memref<768x384xbf16, #tpu.memory_space<vmem>>, vector<768x384xbf16>
    %cst = arith.constant dense<0.000000e+00> : vector<8x384xf32>
    %2 = tpu.matmul %0, %1, %cst {dimension_numbers = #tpu.dot_dimension_numbers<[1], [0], [0], [1], [0, 0, 1, 1], [], []>} : vector<8x768xbf16>, vector<768x384xbf16>, vector<8x384xf32> -> vector<8x384xf32>
    %c0_3 = arith.constant 0 : index
    %c0_4 = arith.constant 0 : index
    %3 = vector.load %arg3[%c0_3, %c0_4] : memref<4x384xf32, #tpu.memory_space<vmem>>, vector<4x384xf32>
    %4 = tpu.concatenate %3, %3 in 0 : vector<4x384xf32>, vector<4x384xf32> -> vector<8x384xf32>
    %5 = arith.addf %2, %4 : vector<8x384xf32>
    %c0_5 = arith.constant 0 : index
    %c0_6 = arith.constant 0 : index
    %6 = vector.load %arg4[%c0_5, %c0_6] : memref<8x384xf32, #tpu.memory_space<vmem>>, vector<8x384xf32>
    tpu.vector_store %arg4[%c0_5, %c0_6], %5 {strides = array<i32>} : memref<8x384xf32, #tpu.memory_space<vmem>>, vector<8x384xf32>,
    return
  }
  func.func @transform_0(%arg0: i32) -> (i32, i32) {
    %c0_i32 = arith.constant 0 : i32
    %c0_i32_0 = arith.constant 0 : i32
    return %arg0, %c0_i32 : i32, i32
  }
  func.func @transform_1(%arg0: i32) -> (i32, i32) {
    %c0_i32 = arith.constant 0 : i32
    %c0_i32_0 = arith.constant 0 : i32
    %c0_i32_1 = arith.constant 0 : i32
    return %c0_i32, %c0_i32_0 : i32, i32
  }
  func.func @transform_2(%arg0: i32) -> (i32, i32) {
    %c0_i32 = arith.constant 0 : i32
    %c0_i32_0 = arith.constant 0 : i32
    %c0_i32_1 = arith.constant 0 : i32
    return %c0_i32, %c0_i32_0 : i32, i32
  }
  func.func @transform_3(%arg0: i32) -> (i32, i32) {
    %c0_i32 = arith.constant 0 : i32
    %c0_i32_0 = arith.constant 0 : i32
    return %arg0, %c0_i32 : i32, i32
  }
}

</mosaic_0001>

<llo_original>
// kernel: vit_input_layer.1
$region0: #{vit_input_layer.1}
  #allocation0 [shape = 'u32[]', space=smem, size = 0x4, offset = 0x4, fixed_abs, tag = 'smem constant byte address 0x4 - core index']
  #allocation1 [shape = 'u32[144,128]{1,0:T(1,128)}', space=vmem, size = 0x12000, scoped, tag = 'internal scratch']
  %s0 = inlined_call_operand.vmem [shape: bf16[8,768], index: 0, kind: input, shape index: {}]
  %s1 = inlined_call_operand.vmem [shape: bf16[768,384], index: 1, kind: input, shape index: {}]
  %s2 = inlined_call_operand.vmem [shape: f32[4,384], index: 2, kind: input, shape index: {}]
  %s3 = inlined_call_operand.vmem [shape: f32[8,384], index: 3, kind: output, shape index: {}]
  %s4 = sld [smem:[#allocation0]]
  $region22: #{vit_input_layer.1} parent=0
    _
  %s6 = ssub.s32 1, %s4
  %s7 = scalar_select 0, %s6, %s4
  // Predicated region
  $region2: #{vit_input_layer.1} parent=0 // pred_check
    _
  $region3: #{vit_input_layer.1} parent=0 // pred_check_branch
    %9 = sbr.rel (0) target = $region5
  $region4: #{vit_input_layer.1} parent=0 // pred_region
    _
  $region5: #{vit_input_layer.1} parent=0 // pred_fallthru
    _
  // Predicated region
  $region6: #{vit_input_layer.1} parent=0 // pred_check
    _
  $region7: #{vit_input_layer.1} parent=0 // pred_check_branch
    %11 = sbr.rel (0) target = $region9
  $region8: #{vit_input_layer.1} parent=0 // pred_region
    _
  $region9: #{vit_input_layer.1} parent=0 // pred_fallthru
    _
  // Predicated region
  $region10: #{vit_input_layer.1} parent=0 // pred_check
    _
  $region11: #{vit_input_layer.1} parent=0 // pred_check_branch
    %13 = sbr.rel (0) target = $region13
  $region12: #{vit_input_layer.1} parent=0 // pred_region
    _
  $region13: #{vit_input_layer.1} parent=0 // pred_fallthru
    _
  %v15 = vld [vmem:[%s0] sm:$0xff]
  %v16 = vld [vmem:[%s0 + $0x8] sm:$0xff]
  %v17 = vld [vmem:[%s0 + $0x10] sm:$0xff]
  %v18 = vld [vmem:[%s1] sm:$0xff]
  %v19 = vld [vmem:[%s1 + $0x8] sm:$0xf]
  %v20 = vld [vmem:[%s1 + $0xc] sm:$0xff]
  %v21 = vld [vmem:[%s1 + $0x14] sm:$0xf]
  %v22 = vld [vmem:[%s1 + $0x18] sm:$0xff]
  %v23 = vld [vmem:[%s1 + $0x20] sm:$0xf]
  %v24 = vld [vmem:[%s1 + $0x24] sm:$0xff]
  %v25 = vld [vmem:[%s1 + $0x2c] sm:$0xf]
  %v26 = vld [vmem:[%s1 + $0x30] sm:$0xff]
  %v27 = vld [vmem:[%s1 + $0x38] sm:$0xf]
  %v28 = vld [vmem:[%s1 + $0x3c] sm:$0xff]
  %v29 = vld [vmem:[%s1 + $0x44] sm:$0xf]
  %v30 = vld [vmem:[%s1 + $0x48] sm:$0xff]
  %v31 = vld [vmem:[%s1 + $0x50] sm:$0xf]
  %v32 = vld [vmem:[%s1 + $0x54] sm:$0xff]
  %v33 = vld [vmem:[%s1 + $0x5c] sm:$0xf]
  %v34 = vld [vmem:[%s1 + $0x60] sm:$0xff]
  %v35 = vld [vmem:[%s1 + $0x68] sm:$0xf]
  %v36 = vld [vmem:[%s1 + $0x6c] sm:$0xff]
  %v37 = vld [vmem:[%s1 + $0x74] sm:$0xf]
  %v38 = vld [vmem:[%s1 + $0x78] sm:$0xff]
  %v39 = vld [vmem:[%s1 + $0x80] sm:$0xf]
  %v40 = vld [vmem:[%s1 + $0x84] sm:$0xff]
  %v41 = vld [vmem:[%s1 + $0x8c] sm:$0xf]
  %v42 = vld [vmem:[%s1 + $0x90] sm:$0xff]
  %v43 = vld [vmem:[%s1 + $0x98] sm:$0xf]
  %v44 = vld [vmem:[%s1 + $0x9c] sm:$0xff]
  %v45 = vld [vmem:[%s1 + $0xa4] sm:$0xf]
  %v46 = vld [vmem:[%s1 + $0xa8] sm:$0xff]
  %v47 = vld [vmem:[%s1 + $0xb0] sm:$0xf]
  %v48 = vld [vmem:[%s1 + $0xb4] sm:$0xff]
  %v49 = vld [vmem:[%s1 + $0xbc] sm:$0xf]
  %v50 = vld [vmem:[%s1 + $0xc0] sm:$0xff]
  %v51 = vld [vmem:[%s1 + $0xc8] sm:$0xf]
  %v52 = vld [vmem:[%s1 + $0xcc] sm:$0xff]
  %v53 = vld [vmem:[%s1 + $0xd4] sm:$0xf]
  %v54 = vld [vmem:[%s1 + $0xd8] sm:$0xff]
  %v55 = vld [vmem:[%s1 + $0xe0] sm:$0xf]
  %v56 = vld [vmem:[%s1 + $0xe4] sm:$0xff]
  %v57 = vld [vmem:[%s1 + $0xec] sm:$0xf]
  %v58 = vld [vmem:[%s1 + $0xf0] sm:$0xff]
  %v59 = vld [vmem:[%s1 + $0xf8] sm:$0xf]
  %v60 = vld [vmem:[%s1 + $0xfc] sm:$0xff]
  %v61 = vld [vmem:[%s1 + $0x104] sm:$0xf]
  %v62 = vld [vmem:[%s1 + $0x108] sm:$0xff]
  %v63 = vld [vmem:[%s1 + $0x110] sm:$0xf]
  %v64 = vld [vmem:[%s1 + $0x114] sm:$0xff]
  %v65 = vld [vmem:[%s1 + $0x11c] sm:$0xf]
  %v66 = vld [vmem:[%s1 + $0x120] sm:$0xff]
  %v67 = vld [vmem:[%s1 + $0x128] sm:$0xf]
  %v68 = vld [vmem:[%s1 + $0x12c] sm:$0xff]
  %v69 = vld [vmem:[%s1 + $0x134] sm:$0xf]
  %v70 = vld [vmem:[%s1 + $0x138] sm:$0xff]
  %v71 = vld [vmem:[%s1 + $0x140] sm:$0xf]
  %v72 = vld [vmem:[%s1 + $0x144] sm:$0xff]
  %v73 = vld [vmem:[%s1 + $0x14c] sm:$0xf]
  %v74 = vld [vmem:[%s1 + $0x150] sm:$0xff]
  %v75 = vld [vmem:[%s1 + $0x158] sm:$0xf]
  %v76 = vld [vmem:[%s1 + $0x15c] sm:$0xff]
  %v77 = vld [vmem:[%s1 + $0x164] sm:$0xf]
  %v78 = vld [vmem:[%s1 + $0x168] sm:$0xff]
  %v79 = vld [vmem:[%s1 + $0x170] sm:$0xf]
  %v80 = vld [vmem:[%s1 + $0x174] sm:$0xff]
  %v81 = vld [vmem:[%s1 + $0x17c] sm:$0xf]
  %v82 = vld [vmem:[%s1 + $0x180] sm:$0xff]
  %v83 = vld [vmem:[%s1 + $0x188] sm:$0xf]
  %v84 = vld [vmem:[%s1 + $0x18c] sm:$0xff]
  %v85 = vld [vmem:[%s1 + $0x194] sm:$0xf]
  %v86 = vld [vmem:[%s1 + $0x198] sm:$0xff]
  %v87 = vld [vmem:[%s1 + $0x1a0] sm:$0xf]
  %v88 = vld [vmem:[%s1 + $0x1a4] sm:$0xff]
  %v89 = vld [vmem:[%s1 + $0x1ac] sm:$0xf]
  %v90 = vld [vmem:[%s1 + $0x1b0] sm:$0xff]
  %v91 = vld [vmem:[%s1 + $0x1b8] sm:$0xf]
  %v92 = vld [vmem:[%s1 + $0x1bc] sm:$0xff]
  %v93 = vld [vmem:[%s1 + $0x1c4] sm:$0xf]
  %v94 = vld [vmem:[%s1 + $0x1c8] sm:$0xff]
  %v95 = vld [vmem:[%s1 + $0x1d0] sm:$0xf]
  %v96 = vld [vmem:[%s1 + $0x1d4] sm:$0xff]
  %v97 = vld [vmem:[%s1 + $0x1dc] sm:$0xf]
  %v98 = vld [vmem:[%s1 + $0x1e0] sm:$0xff]
  %v99 = vld [vmem:[%s1 + $0x1e8] sm:$0xf]
  %v100 = vld [vmem:[%s1 + $0x1ec] sm:$0xff]
  %v101 = vld [vmem:[%s1 + $0x1f4] sm:$0xf]
  %v102 = vld [vmem:[%s1 + $0x1f8] sm:$0xff]
  %v103 = vld [vmem:[%s1 + $0x200] sm:$0xf]
  %v104 = vld [vmem:[%s1 + $0x204] sm:$0xff]
  %v105 = vld [vmem:[%s1 + $0x20c] sm:$0xf]
  %v106 = vld [vmem:[%s1 + $0x210] sm:$0xff]
  %v107 = vld [vmem:[%s1 + $0x218] sm:$0xf]
  %v108 = vld [vmem:[%s1 + $0x21c] sm:$0xff]
  %v109 = vld [vmem:[%s1 + $0x224] sm:$0xf]
  %v110 = vld [vmem:[%s1 + $0x228] sm:$0xff]
  %v111 = vld [vmem:[%s1 + $0x230] sm:$0xf]
  %v112 = vld [vmem:[%s1 + $0x234] sm:$0xff]
  %v113 = vld [vmem:[%s1 + $0x23c] sm:$0xf]
  %v114 = vld [vmem:[%s1 + $0x240] sm:$0xff]
  %v115 = vld [vmem:[%s1 + $0x248] sm:$0xf]
  %v116 = vld [vmem:[%s1 + $0x24c] sm:$0xff]
  %v117 = vld [vmem:[%s1 + $0x254] sm:$0xf]
  %v118 = vld [vmem:[%s1 + $0x258] sm:$0xff]
  %v119 = vld [vmem:[%s1 + $0x260] sm:$0xf]
  %v120 = vld [vmem:[%s1 + $0x264] sm:$0xff]
  %v121 = vld [vmem:[%s1 + $0x26c] sm:$0xf]
  %v122 = vld [vmem:[%s1 + $0x270] sm:$0xff]
  %v123 = vld [vmem:[%s1 + $0x278] sm:$0xf]
  %v124 = vld [vmem:[%s1 + $0x27c] sm:$0xff]
  %v125 = vld [vmem:[%s1 + $0x284] sm:$0xf]
  %v126 = vld [vmem:[%s1 + $0x288] sm:$0xff]
  %v127 = vld [vmem:[%s1 + $0x290] sm:$0xf]
  %v128 = vld [vmem:[%s1 + $0x294] sm:$0xff]
  %v129 = vld [vmem:[%s1 + $0x29c] sm:$0xf]
  %v130 = vld [vmem:[%s1 + $0x2a0] sm:$0xff]
  %v131 = vld [vmem:[%s1 + $0x2a8] sm:$0xf]
  %v132 = vld [vmem:[%s1 + $0x2ac] sm:$0xff]
  %v133 = vld [vmem:[%s1 + $0x2b4] sm:$0xf]
  %v134 = vld [vmem:[%s1 + $0x2b8] sm:$0xff]
  %v135 = vld [vmem:[%s1 + $0x2c0] sm:$0xf]
  %v136 = vld [vmem:[%s1 + $0x2c4] sm:$0xff]
  %v137 = vld [vmem:[%s1 + $0x2cc] sm:$0xf]
  %v138 = vld [vmem:[%s1 + $0x2d0] sm:$0xff]
  %v139 = vld [vmem:[%s1 + $0x2d8] sm:$0xf]
  %v140 = vld [vmem:[%s1 + $0x2dc] sm:$0xff]
  %v141 = vld [vmem:[%s1 + $0x2e4] sm:$0xf]
  %v142 = vld [vmem:[%s1 + $0x2e8] sm:$0xff]
  %v143 = vld [vmem:[%s1 + $0x2f0] sm:$0xf]
  %v144 = vld [vmem:[%s1 + $0x2f4] sm:$0xff]
  %v145 = vld [vmem:[%s1 + $0x2fc] sm:$0xf]
  %v146 = vld [vmem:[%s1 + $0x300] sm:$0xff]
  %v147 = vld [vmem:[%s1 + $0x308] sm:$0xf]
  %v148 = vld [vmem:[%s1 + $0x30c] sm:$0xff]
  %v149 = vld [vmem:[%s1 + $0x314] sm:$0xf]
  %v150 = vld [vmem:[%s1 + $0x318] sm:$0xff]
  %v151 = vld [vmem:[%s1 + $0x320] sm:$0xf]
  %v152 = vld [vmem:[%s1 + $0x324] sm:$0xff]
  %v153 = vld [vmem:[%s1 + $0x32c] sm:$0xf]
  %v154 = vld [vmem:[%s1 + $0x330] sm:$0xff]
  %v155 = vld [vmem:[%s1 + $0x338] sm:$0xf]
  %v156 = vld [vmem:[%s1 + $0x33c] sm:$0xff]
  %v157 = vld [vmem:[%s1 + $0x344] sm:$0xf]
  %v158 = vld [vmem:[%s1 + $0x348] sm:$0xff]
  %v159 = vld [vmem:[%s1 + $0x350] sm:$0xf]
  %v160 = vld [vmem:[%s1 + $0x354] sm:$0xff]
  %v161 = vld [vmem:[%s1 + $0x35c] sm:$0xf]
  %v162 = vld [vmem:[%s1 + $0x360] sm:$0xff]
  %v163 = vld [vmem:[%s1 + $0x368] sm:$0xf]
  %v164 = vld [vmem:[%s1 + $0x36c] sm:$0xff]
  %v165 = vld [vmem:[%s1 + $0x374] sm:$0xf]
  %v166 = vld [vmem:[%s1 + $0x378] sm:$0xff]
  %v167 = vld [vmem:[%s1 + $0x380] sm:$0xf]
  %v168 = vld [vmem:[%s1 + $0x384] sm:$0xff]
  %v169 = vld [vmem:[%s1 + $0x38c] sm:$0xf]
  %v170 = vld [vmem:[%s1 + $0x390] sm:$0xff]
  %v171 = vld [vmem:[%s1 + $0x398] sm:$0xf]
  %v172 = vld [vmem:[%s1 + $0x39c] sm:$0xff]
  %v173 = vld [vmem:[%s1 + $0x3a4] sm:$0xf]
  %v174 = vld [vmem:[%s1 + $0x3a8] sm:$0xff]
  %v175 = vld [vmem:[%s1 + $0x3b0] sm:$0xf]
  %v176 = vld [vmem:[%s1 + $0x3b4] sm:$0xff]
  %v177 = vld [vmem:[%s1 + $0x3bc] sm:$0xf]
  %v178 = vld [vmem:[%s1 + $0x3c0] sm:$0xff]
  %v179 = vld [vmem:[%s1 + $0x3c8] sm:$0xf]
  %v180 = vld [vmem:[%s1 + $0x3cc] sm:$0xff]
  %v181 = vld [vmem:[%s1 + $0x3d4] sm:$0xf]
  %v182 = vld [vmem:[%s1 + $0x3d8] sm:$0xff]
  %v183 = vld [vmem:[%s1 + $0x3e0] sm:$0xf]
  %v184 = vld [vmem:[%s1 + $0x3e4] sm:$0xff]
  %v185 = vld [vmem:[%s1 + $0x3ec] sm:$0xf]
  %v186 = vld [vmem:[%s1 + $0x3f0] sm:$0xff]
  %v187 = vld [vmem:[%s1 + $0x3f8] sm:$0xf]
  %v188 = vld [vmem:[%s1 + $0x3fc] sm:$0xff]
  %v189 = vld [vmem:[%s1 + $0x404] sm:$0xf]
  %v190 = vld [vmem:[%s1 + $0x408] sm:$0xff]
  %v191 = vld [vmem:[%s1 + $0x410] sm:$0xf]
  %v192 = vld [vmem:[%s1 + $0x414] sm:$0xff]
  %v193 = vld [vmem:[%s1 + $0x41c] sm:$0xf]
  %v194 = vld [vmem:[%s1 + $0x420] sm:$0xff]
  %v195 = vld [vmem:[%s1 + $0x428] sm:$0xf]
  %v196 = vld [vmem:[%s1 + $0x42c] sm:$0xff]
  %v197 = vld [vmem:[%s1 + $0x434] sm:$0xf]
  %v198 = vld [vmem:[%s1 + $0x438] sm:$0xff]
  %v199 = vld [vmem:[%s1 + $0x440] sm:$0xf]
  %v200 = vld [vmem:[%s1 + $0x444] sm:$0xff]
  %v201 = vld [vmem:[%s1 + $0x44c] sm:$0xf]
  %v202 = vld [vmem:[%s1 + $0x450] sm:$0xff]
  %v203 = vld [vmem:[%s1 + $0x458] sm:$0xf]
  %v204 = vld [vmem:[%s1 + $0x45c] sm:$0xff]
  %v205 = vld [vmem:[%s1 + $0x464] sm:$0xf]
  %v206 = vld [vmem:[%s1 + $0x468] sm:$0xff]
  %v207 = vld [vmem:[%s1 + $0x470] sm:$0xf]
  %v208 = vld [vmem:[%s1 + $0x474] sm:$0xff]
  %v209 = vld [vmem:[%s1 + $0x47c] sm:$0xf]
  %v210 = vld [vmem:[%s2] sm:$0xff]
  %v211 = vld [vmem:[%s2 + $0x8] sm:$0xf]
  %v214 = vcombine.high %v210, %v210
  %v216 = vcombine.low %v210, %v210
  %v217 = vcombine.low %v211, %v211
  %vm220 = vcmask 1043456
  %v221 = vsel %vm220, %v210, %v216
  %v222 = vsel %vm220, %v214, %v210
  %v223 = vsel %vm220, %v211, %v217
  %v227 = vunpack.c.l.b16 %v15
  %v228 = vunpack.c.h.b16 %v15
  %v229 = vunpack.c.l.b16 %v16
  %v230 = vunpack.c.h.b16 %v16
  %v231 = vunpack.c.l.b16 %v17
  %v232 = vunpack.c.h.b16 %v17
  %v233 = vpack.c.b16 %v227, %v227
  %v234 = vpack.c.b16 %v228, %v228
  %v235 = vpack.c.b16 %v229, %v229
  %v236 = vpack.c.b16 %v230, %v230
  %v237 = vpack.c.b16 %v231, %v231
  %v238 = vpack.c.b16 %v232, %v232
  %v437 = vunpack.c.l.b16 %v18
  %v438 = vunpack.c.h.b16 %v18
  %v439 = vunpack.c.l.b16 %v19
  %v440 = vunpack.c.l.b16 %v20
  %v441 = vunpack.c.h.b16 %v20
  %v442 = vunpack.c.l.b16 %v21
  %v443 = vunpack.c.l.b16 %v22
  %v444 = vunpack.c.h.b16 %v22
  %v445 = vunpack.c.l.b16 %v23
  %v446 = vunpack.c.l.b16 %v24
  %v447 = vunpack.c.h.b16 %v24
  %v448 = vunpack.c.l.b16 %v25
  %v449 = vunpack.c.l.b16 %v26
  %v450 = vunpack.c.h.b16 %v26
  %v451 = vunpack.c.l.b16 %v27
  %v452 = vunpack.c.l.b16 %v28
  %v453 = vunpack.c.h.b16 %v28
  %v454 = vunpack.c.l.b16 %v29
  %v455 = vunpack.c.l.b16 %v30
  %v456 = vunpack.c.h.b16 %v30
  %v457 = vunpack.c.l.b16 %v31
  %v458 = vunpack.c.l.b16 %v32
  %v459 = vunpack.c.h.b16 %v32
  %v460 = vunpack.c.l.b16 %v33
  %v461 = vunpack.c.l.b16 %v34
  %v462 = vunpack.c.h.b16 %v34
  %v463 = vunpack.c.l.b16 %v35
  %v464 = vunpack.c.l.b16 %v36
  %v465 = vunpack.c.h.b16 %v36
  %v466 = vunpack.c.l.b16 %v37
  %v467 = vunpack.c.l.b16 %v38
  %v468 = vunpack.c.h.b16 %v38
  %v469 = vunpack.c.l.b16 %v39
  %v470 = vunpack.c.l.b16 %v40
  %v471 = vunpack.c.h.b16 %v40
  %v472 = vunpack.c.l.b16 %v41
  %v473 = vunpack.c.l.b16 %v42
  %v474 = vunpack.c.h.b16 %v42
  %v475 = vunpack.c.l.b16 %v43
  %v476 = vunpack.c.l.b16 %v44
  %v477 = vunpack.c.h.b16 %v44
  %v478 = vunpack.c.l.b16 %v45
  %v479 = vunpack.c.l.b16 %v46
  %v480 = vunpack.c.h.b16 %v46
  %v481 = vunpack.c.l.b16 %v47
  %v482 = vunpack.c.l.b16 %v48
  %v483 = vunpack.c.h.b16 %v48
  %v484 = vunpack.c.l.b16 %v49
  %v485 = vunpack.c.l.b16 %v50
  %v486 = vunpack.c.h.b16 %v50
  %v487 = vunpack.c.l.b16 %v51
  %v488 = vunpack.c.l.b16 %v52
  %v489 = vunpack.c.h.b16 %v52
  %v490 = vunpack.c.l.b16 %v53
  %v491 = vunpack.c.l.b16 %v54
  %v492 = vunpack.c.h.b16 %v54
  %v493 = vunpack.c.l.b16 %v55
  %v494 = vunpack.c.l.b16 %v56
  %v495 = vunpack.c.h.b16 %v56
  %v496 = vunpack.c.l.b16 %v57
  %v497 = vunpack.c.l.b16 %v58
  %v498 = vunpack.c.h.b16 %v58
  %v499 = vunpack.c.l.b16 %v59
  %v500 = vunpack.c.l.b16 %v60
  %v501 = vunpack.c.h.b16 %v60
  %v502 = vunpack.c.l.b16 %v61
  %v503 = vunpack.c.l.b16 %v62
  %v504 = vunpack.c.h.b16 %v62
  %v505 = vunpack.c.l.b16 %v63
  %v506 = vunpack.c.l.b16 %v64
  %v507 = vunpack.c.h.b16 %v64
  %v508 = vunpack.c.l.b16 %v65
  %v509 = vunpack.c.l.b16 %v66
  %v510 = vunpack.c.h.b16 %v66
  %v511 = vunpack.c.l.b16 %v67
  %v512 = vunpack.c.l.b16 %v68
  %v513 = vunpack.c.h.b16 %v68
  %v514 = vunpack.c.l.b16 %v69
  %v515 = vunpack.c.l.b16 %v70
  %v516 = vunpack.c.h.b16 %v70
  %v517 = vunpack.c.l.b16 %v71
  %v518 = vunpack.c.l.b16 %v72
  %v519 = vunpack.c.h.b16 %v72
  %v520 = vunpack.c.l.b16 %v73
  %v521 = vunpack.c.l.b16 %v74
  %v522 = vunpack.c.h.b16 %v74
  %v523 = vunpack.c.l.b16 %v75
  %v524 = vunpack.c.l.b16 %v76
  %v525 = vunpack.c.h.b16 %v76
  %v526 = vunpack.c.l.b16 %v77
  %v527 = vunpack.c.l.b16 %v78
  %v528 = vunpack.c.h.b16 %v78
  %v529 = vunpack.c.l.b16 %v79
  %v530 = vunpack.c.l.b16 %v80
  %v531 = vunpack.c.h.b16 %v80
  %v532 = vunpack.c.l.b16 %v81
  %v533 = vunpack.c.l.b16 %v82
  %v534 = vunpack.c.h.b16 %v82
  %v535 = vunpack.c.l.b16 %v83
  %v536 = vunpack.c.l.b16 %v84
  %v537 = vunpack.c.h.b16 %v84
  %v538 = vunpack.c.l.b16 %v85
  %v539 = vunpack.c.l.b16 %v86
  %v540 = vunpack.c.h.b16 %v86
  %v541 = vunpack.c.l.b16 %v87
  %v542 = vunpack.c.l.b16 %v88
  %v543 = vunpack.c.h.b16 %v88
  %v544 = vunpack.c.l.b16 %v89
  %v545 = vunpack.c.l.b16 %v90
  %v546 = vunpack.c.h.b16 %v90
  %v547 = vunpack.c.l.b16 %v91
  %v548 = vunpack.c.l.b16 %v92
  %v549 = vunpack.c.h.b16 %v92
  %v550 = vunpack.c.l.b16 %v93
  %v551 = vunpack.c.l.b16 %v94
  %v552 = vunpack.c.h.b16 %v94
  %v553 = vunpack.c.l.b16 %v95
  %v554 = vunpack.c.l.b16 %v96
  %v555 = vunpack.c.h.b16 %v96
  %v556 = vunpack.c.l.b16 %v97
  %v557 = vunpack.c.l.b16 %v98
  %v558 = vunpack.c.h.b16 %v98
  %v559 = vunpack.c.l.b16 %v99
  %v560 = vunpack.c.l.b16 %v100
  %v561 = vunpack.c.h.b16 %v100
  %v562 = vunpack.c.l.b16 %v101
  %v563 = vunpack.c.l.b16 %v102
  %v564 = vunpack.c.h.b16 %v102
  %v565 = vunpack.c.l.b16 %v103
  %v566 = vunpack.c.l.b16 %v104
  %v567 = vunpack.c.h.b16 %v104
  %v568 = vunpack.c.l.b16 %v105
  %v569 = vunpack.c.l.b16 %v106
  %v570 = vunpack.c.h.b16 %v106
  %v571 = vunpack.c.l.b16 %v107
  %v572 = vunpack.c.l.b16 %v108
  %v573 = vunpack.c.h.b16 %v108
  %v574 = vunpack.c.l.b16 %v109
  %v575 = vunpack.c.l.b16 %v110
  %v576 = vunpack.c.h.b16 %v110
  %v577 = vunpack.c.l.b16 %v111
  %v578 = vunpack.c.l.b16 %v112
  %v579 = vunpack.c.h.b16 %v112
  %v580 = vunpack.c.l.b16 %v113
  %v581 = vunpack.c.l.b16 %v114
  %v582 = vunpack.c.h.b16 %v114
  %v583 = vunpack.c.l.b16 %v115
  %v584 = vunpack.c.l.b16 %v116
  %v585 = vunpack.c.h.b16 %v116
  %v586 = vunpack.c.l.b16 %v117
  %v587 = vunpack.c.l.b16 %v118
  %v588 = vunpack.c.h.b16 %v118
  %v589 = vunpack.c.l.b16 %v119
  %v590 = vunpack.c.l.b16 %v120
  %v591 = vunpack.c.h.b16 %v120
  %v592 = vunpack.c.l.b16 %v121
  %v593 = vunpack.c.l.b16 %v122
  %v594 = vunpack.c.h.b16 %v122
  %v595 = vunpack.c.l.b16 %v123
  %v596 = vunpack.c.l.b16 %v124
  %v597 = vunpack.c.h.b16 %v124
  %v598 = vunpack.c.l.b16 %v125
  %v599 = vunpack.c.l.b16 %v126
  %v600 = vunpack.c.h.b16 %v126
  %v601 = vunpack.c.l.b16 %v127
  %v602 = vunpack.c.l.b16 %v128
  %v603 = vunpack.c.h.b16 %v128
  %v604 = vunpack.c.l.b16 %v129
  %v605 = vunpack.c.l.b16 %v130
  %v606 = vunpack.c.h.b16 %v130
  %v607 = vunpack.c.l.b16 %v131
  %v608 = vunpack.c.l.b16 %v132
  %v609 = vunpack.c.h.b16 %v132
  %v610 = vunpack.c.l.b16 %v133
  %v611 = vunpack.c.l.b16 %v134
  %v612 = vunpack.c.h.b16 %v134
  %v613 = vunpack.c.l.b16 %v135
  %v614 = vunpack.c.l.b16 %v136
  %v615 = vunpack.c.h.b16 %v136
  %v616 = vunpack.c.l.b16 %v137
  %v617 = vunpack.c.l.b16 %v138
  %v618 = vunpack.c.h.b16 %v138
  %v619 = vunpack.c.l.b16 %v139
  %v620 = vunpack.c.l.b16 %v140
  %v621 = vunpack.c.h.b16 %v140
  %v622 = vunpack.c.l.b16 %v141
  %v623 = vunpack.c.l.b16 %v142
  %v624 = vunpack.c.h.b16 %v142
  %v625 = vunpack.c.l.b16 %v143
  %v626 = vunpack.c.l.b16 %v144
  %v627 = vunpack.c.h.b16 %v144
  %v628 = vunpack.c.l.b16 %v145
  %v629 = vunpack.c.l.b16 %v146
  %v630 = vunpack.c.h.b16 %v146
  %v631 = vunpack.c.l.b16 %v147
  %v632 = vunpack.c.l.b16 %v148
  %v633 = vunpack.c.h.b16 %v148
  %v634 = vunpack.c.l.b16 %v149
  %v635 = vunpack.c.l.b16 %v150
  %v636 = vunpack.c.h.b16 %v150
  %v637 = vunpack.c.l.b16 %v151
  %v638 = vunpack.c.l.b16 %v152
  %v639 = vunpack.c.h.b16 %v152
  %v640 = vunpack.c.l.b16 %v153
  %v641 = vunpack.c.l.b16 %v154
  %v642 = vunpack.c.h.b16 %v154
  %v643 = vunpack.c.l.b16 %v155
  %v644 = vunpack.c.l.b16 %v156
  %v645 = vunpack.c.h.b16 %v156
  %v646 = vunpack.c.l.b16 %v157
  %v647 = vunpack.c.l.b16 %v158
  %v648 = vunpack.c.h.b16 %v158
  %v649 = vunpack.c.l.b16 %v159
  %v650 = vunpack.c.l.b16 %v160
  %v651 = vunpack.c.h.b16 %v160
  %v652 = vunpack.c.l.b16 %v161
  %v653 = vunpack.c.l.b16 %v162
  %v654 = vunpack.c.h.b16 %v162
  %v655 = vunpack.c.l.b16 %v163
  %v656 = vunpack.c.l.b16 %v164
  %v657 = vunpack.c.h.b16 %v164
  %v658 = vunpack.c.l.b16 %v165
  %v659 = vunpack.c.l.b16 %v166
  %v660 = vunpack.c.h.b16 %v166
  %v661 = vunpack.c.l.b16 %v167
  %v662 = vunpack.c.l.b16 %v168
  %v663 = vunpack.c.h.b16 %v168
  %v664 = vunpack.c.l.b16 %v169
  %v665 = vunpack.c.l.b16 %v170
  %v666 = vunpack.c.h.b16 %v170
  %v667 = vunpack.c.l.b16 %v171
  %v668 = vunpack.c.l.b16 %v172
  %v669 = vunpack.c.h.b16 %v172
  %v670 = vunpack.c.l.b16 %v173
  %v671 = vunpack.c.l.b16 %v174
  %v672 = vunpack.c.h.b16 %v174
  %v673 = vunpack.c.l.b16 %v175
  %v674 = vunpack.c.l.b16 %v176
  %v675 = vunpack.c.h.b16 %v176
  %v676 = vunpack.c.l.b16 %v177
  %v677 = vunpack.c.l.b16 %v178
  %v678 = vunpack.c.h.b16 %v178
  %v679 = vunpack.c.l.b16 %v179
  %v680 = vunpack.c.l.b16 %v180
  %v681 = vunpack.c.h.b16 %v180
  %v682 = vunpack.c.l.b16 %v181
  %v683 = vunpack.c.l.b16 %v182
  %v684 = vunpack.c.h.b16 %v182
  %v685 = vunpack.c.l.b16 %v183
  %v686 = vunpack.c.l.b16 %v184
  %v687 = vunpack.c.h.b16 %v184
  %v688 = vunpack.c.l.b16 %v185
  %v689 = vunpack.c.l.b16 %v186
  %v690 = vunpack.c.h.b16 %v186
  %v691 = vunpack.c.l.b16 %v187
  %v692 = vunpack.c.l.b16 %v188
  %v693 = vunpack.c.h.b16 %v188
  %v694 = vunpack.c.l.b16 %v189
  %v695 = vunpack.c.l.b16 %v190
  %v696 = vunpack.c.h.b16 %v190
  %v697 = vunpack.c.l.b16 %v191
  %v698 = vunpack.c.l.b16 %v192
  %v699 = vunpack.c.h.b16 %v192
  %v700 = vunpack.c.l.b16 %v193
  %v701 = vunpack.c.l.b16 %v194
  %v702 = vunpack.c.h.b16 %v194
  %v703 = vunpack.c.l.b16 %v195
  %v704 = vunpack.c.l.b16 %v196
  %v705 = vunpack.c.h.b16 %v196
  %v706 = vunpack.c.l.b16 %v197
  %v707 = vunpack.c.l.b16 %v198
  %v708 = vunpack.c.h.b16 %v198
  %v709 = vunpack.c.l.b16 %v199
  %v710 = vunpack.c.l.b16 %v200
  %v711 = vunpack.c.h.b16 %v200
  %v712 = vunpack.c.l.b16 %v201
  %v713 = vunpack.c.l.b16 %v202
  %v714 = vunpack.c.h.b16 %v202
  %v715 = vunpack.c.l.b16 %v203
  %v716 = vunpack.c.l.b16 %v204
  %v717 = vunpack.c.h.b16 %v204
  %v718 = vunpack.c.l.b16 %v205
  %v719 = vunpack.c.l.b16 %v206
  %v720 = vunpack.c.h.b16 %v206
  %v721 = vunpack.c.l.b16 %v207
  %v722 = vunpack.c.l.b16 %v208
  %v723 = vunpack.c.h.b16 %v208
  %v724 = vunpack.c.l.b16 %v209
  %v725 = vpack.c.b16 %v440, %v437
  %v726 = vpack.c.b16 %v441, %v438
  %v727 = vpack.c.b16 %v442, %v439
  %v728 = vpack.c.b16 %v446, %v443
  %v729 = vpack.c.b16 %v447, %v444
  %v730 = vpack.c.b16 %v448, %v445
  %v731 = vpack.c.b16 %v452, %v449
  %v732 = vpack.c.b16 %v453, %v450
  %v733 = vpack.c.b16 %v454, %v451
  %v734 = vpack.c.b16 %v458, %v455
  %v735 = vpack.c.b16 %v459, %v456
  %v736 = vpack.c.b16 %v460, %v457
  %v737 = vpack.c.b16 %v464, %v461
  %v738 = vpack.c.b16 %v465, %v462
  %v739 = vpack.c.b16 %v466, %v463
  %v740 = vpack.c.b16 %v470, %v467
  %v741 = vpack.c.b16 %v471, %v468
  %v742 = vpack.c.b16 %v472, %v469
  %v743 = vpack.c.b16 %v476, %v473
  %v744 = vpack.c.b16 %v477, %v474
  %v745 = vpack.c.b16 %v478, %v475
  %v746 = vpack.c.b16 %v482, %v479
  %v747 = vpack.c.b16 %v483, %v480
  %v748 = vpack.c.b16 %v484, %v481
  %v749 = vpack.c.b16 %v488, %v485
  %v750 = vpack.c.b16 %v489, %v486
  %v751 = vpack.c.b16 %v490, %v487
  %v752 = vpack.c.b16 %v494, %v491
  %v753 = vpack.c.b16 %v495, %v492
  %v754 = vpack.c.b16 %v496, %v493
  %v755 = vpack.c.b16 %v500, %v497
  %v756 = vpack.c.b16 %v501, %v498
  %v757 = vpack.c.b16 %v502, %v499
  %v758 = vpack.c.b16 %v506, %v503
  %v759 = vpack.c.b16 %v507, %v504
  %v760 = vpack.c.b16 %v508, %v505
  %v761 = vpack.c.b16 %v512, %v509
  %v762 = vpack.c.b16 %v513, %v510
  %v763 = vpack.c.b16 %v514, %v511
  %v764 = vpack.c.b16 %v518, %v515
  %v765 = vpack.c.b16 %v519, %v516
  %v766 = vpack.c.b16 %v520, %v517
  %v767 = vpack.c.b16 %v524, %v521
  %v768 = vpack.c.b16 %v525, %v522
  %v769 = vpack.c.b16 %v526, %v523
  %v770 = vpack.c.b16 %v530, %v527
  %v771 = vpack.c.b16 %v531, %v528
  %v772 = vpack.c.b16 %v532, %v529
  %v773 = vpack.c.b16 %v536, %v533
  %v774 = vpack.c.b16 %v537, %v534
  %v775 = vpack.c.b16 %v538, %v535
  %v776 = vpack.c.b16 %v542, %v539
  %v777 = vpack.c.b16 %v543, %v540
  %v778 = vpack.c.b16 %v544, %v541
  %v779 = vpack.c.b16 %v548, %v545
  %v780 = vpack.c.b16 %v549, %v546
  %v781 = vpack.c.b16 %v550, %v547
  %v782 = vpack.c.b16 %v554, %v551
  %v783 = vpack.c.b16 %v555, %v552
  %v784 = vpack.c.b16 %v556, %v553
  %v785 = vpack.c.b16 %v560, %v557
  %v786 = vpack.c.b16 %v561, %v558
  %v787 = vpack.c.b16 %v562, %v559
  %v788 = vpack.c.b16 %v566, %v563
  %v789 = vpack.c.b16 %v567, %v564
  %v790 = vpack.c.b16 %v568, %v565
  %v791 = vpack.c.b16 %v572, %v569
  %v792 = vpack.c.b16 %v573, %v570
  %v793 = vpack.c.b16 %v574, %v571
  %v794 = vpack.c.b16 %v578, %v575
  %v795 = vpack.c.b16 %v579, %v576
  %v796 = vpack.c.b16 %v580, %v577
  %v797 = vpack.c.b16 %v584, %v581
  %v798 = vpack.c.b16 %v585, %v582
  %v799 = vpack.c.b16 %v586, %v583
  %v800 = vpack.c.b16 %v590, %v587
  %v801 = vpack.c.b16 %v591, %v588
  %v802 = vpack.c.b16 %v592, %v589
  %v803 = vpack.c.b16 %v596, %v593
  %v804 = vpack.c.b16 %v597, %v594
  %v805 = vpack.c.b16 %v598, %v595
  %v806 = vpack.c.b16 %v602, %v599
  %v807 = vpack.c.b16 %v603, %v600
  %v808 = vpack.c.b16 %v604, %v601
  %v809 = vpack.c.b16 %v608, %v605
  %v810 = vpack.c.b16 %v609, %v606
  %v811 = vpack.c.b16 %v610, %v607
  %v812 = vpack.c.b16 %v614, %v611
  %v813 = vpack.c.b16 %v615, %v612
  %v814 = vpack.c.b16 %v616, %v613
  %v815 = vpack.c.b16 %v620, %v617
  %v816 = vpack.c.b16 %v621, %v618
  %v817 = vpack.c.b16 %v622, %v619
  %v818 = vpack.c.b16 %v626, %v623
  %v819 = vpack.c.b16 %v627, %v624
  %v820 = vpack.c.b16 %v628, %v625
  %v821 = vpack.c.b16 %v632, %v629
  %v822 = vpack.c.b16 %v633, %v630
  %v823 = vpack.c.b16 %v634, %v631
  %v824 = vpack.c.b16 %v638, %v635
  %v825 = vpack.c.b16 %v639, %v636
  %v826 = vpack.c.b16 %v640, %v637
  %v827 = vpack.c.b16 %v644, %v641
  %v828 = vpack.c.b16 %v645, %v642
  %v829 = vpack.c.b16 %v646, %v643
  %v830 = vpack.c.b16 %v650, %v647
  %v831 = vpack.c.b16 %v651, %v648
  %v832 = vpack.c.b16 %v652, %v649
  %v833 = vpack.c.b16 %v656, %v653
  %v834 = vpack.c.b16 %v657, %v654
  %v835 = vpack.c.b16 %v658, %v655
  %v836 = vpack.c.b16 %v662, %v659
  %v837 = vpack.c.b16 %v663, %v660
  %v838 = vpack.c.b16 %v664, %v661
  %v839 = vpack.c.b16 %v668, %v665
  %v840 = vpack.c.b16 %v669, %v666
  %v841 = vpack.c.b16 %v670, %v667
  %v842 = vpack.c.b16 %v674, %v671
  %v843 = vpack.c.b16 %v675, %v672
  %v844 = vpack.c.b16 %v676, %v673
  %v845 = vpack.c.b16 %v680, %v677
  %v846 = vpack.c.b16 %v681, %v678
  %v847 = vpack.c.b16 %v682, %v679
  %v848 = vpack.c.b16 %v686, %v683
  %v849 = vpack.c.b16 %v687, %v684
  %v850 = vpack.c.b16 %v688, %v685
  %v851 = vpack.c.b16 %v692, %v689
  %v852 = vpack.c.b16 %v693, %v690
  %v853 = vpack.c.b16 %v694, %v691
  %v854 = vpack.c.b16 %v698, %v695
  %v855 = vpack.c.b16 %v699, %v696
  %v856 = vpack.c.b16 %v700, %v697
  %v857 = vpack.c.b16 %v704, %v701
  %v858 = vpack.c.b16 %v705, %v702
  %v859 = vpack.c.b16 %v706, %v703
  %v860 = vpack.c.b16 %v710, %v707
  %v861 = vpack.c.b16 %v711, %v708
  %v862 = vpack.c.b16 %v712, %v709
  %v863 = vpack.c.b16 %v716, %v713
  %v864 = vpack.c.b16 %v717, %v714
  %v865 = vpack.c.b16 %v718, %v715
  %v866 = vpack.c.b16 %v722, %v719
  %v867 = vpack.c.b16 %v723, %v720
  %v868 = vpack.c.b16 %v724, %v721
  %1013 = vmatprep.subr.bf16.mxu0 %v726
  %1014 = vmatpush1.bf16.msra.mxu0 %v725
  %1015 = vmatprep.subr.bf16.mxu0 %v729
  %1016 = vmatpush1.bf16.msra.mxu0 %v728
  %1017 = vmatprep.subr.bf16.mxu0 %v732
  %1018 = vmatpush1.bf16.msra.mxu0 %v731
  %1019 = vmatprep.subr.bf16.mxu0 %v735
  %1020 = vmatpush1.bf16.msra.mxu0 %v734
  %1021 = vmatprep.subr.bf16.mxu0 %v738
  %1022 = vmatpush1.bf16.msra.mxu0 %v737
  %1023 = vmatprep.subr.bf16.mxu0 %v741
  %1024 = vmatpush1.bf16.msra.mxu0 %v740
  %1025 = vmatprep.subr.bf16.mxu0 %v744
  %1026 = vmatpush1.bf16.msra.mxu0 %v743
  %1027 = vmatprep.subr.bf16.mxu0 %v747
  %1028 = vmatpush1.bf16.msra.mxu0 %v746
  %1029 = vmatprep.subr.bf16.mxu0 %v750
  %1030 = vmatpush1.bf16.msra.mxu0 %v749
  %1031 = vmatprep.subr.bf16.mxu0 %v753
  %1032 = vmatpush1.bf16.msra.mxu0 %v752
  %1033 = vmatprep.subr.bf16.mxu0 %v756
  %1034 = vmatpush1.bf16.msra.mxu0 %v755
  %1035 = vmatprep.subr.bf16.mxu0 %v759
  %1036 = vmatpush1.bf16.msra.mxu0 %v758
  %1037 = vmatprep.subr.bf16.mxu0 %v762
  %1038 = vmatpush1.bf16.msra.mxu0 %v761
  %1039 = vmatprep.subr.bf16.mxu0 %v765
  %1040 = vmatpush1.bf16.msra.mxu0 %v764
  %1041 = vmatprep.subr.bf16.mxu0 %v768
  %1042 = vmatpush1.bf16.msra.mxu0 %v767
  %1043 = vmatprep.subr.bf16.mxu0 %v771
  %1044 = vmatpush1.bf16.msra.mxu0 %v770
  %1045 = vmatprep.mubr.bf16.mxu0 %v234
  %1046 = vmatmul.mubr.bf16.gmra.mrb[0].mxu0 %v233
  %v1047 = vpop.f32.mrb[0].mxu0
  %v1048 = vadd.f32 %v221, %v1047
  %v1049 = vpop.f32.mrb[0].mxu0
  %v1050 = vadd.f32 %v222, %v1049
  %v1051 = vpop.f32.mrb[0].mxu0
  %v1052 = vpop.f32.mrb[0].mxu0
  %1053 = vdwg.mxu0
  %1054 = vmatprep.subr.bf16.mxu0 %v774
  %1055 = vmatpush1.bf16.msra.mxu0 %v773
  %1056 = vmatprep.subr.bf16.mxu0 %v777
  %1057 = vmatpush1.bf16.msra.mxu0 %v776
  %1058 = vmatprep.subr.bf16.mxu0 %v780
  %1059 = vmatpush1.bf16.msra.mxu0 %v779
  %1060 = vmatprep.subr.bf16.mxu0 %v783
  %1061 = vmatpush1.bf16.msra.mxu0 %v782
  %1062 = vmatprep.subr.bf16.mxu0 %v786
  %1063 = vmatpush1.bf16.msra.mxu0 %v785
  %1064 = vmatprep.subr.bf16.mxu0 %v789
  %1065 = vmatpush1.bf16.msra.mxu0 %v788
  %1066 = vmatprep.subr.bf16.mxu0 %v792
  %1067 = vmatpush1.bf16.msra.mxu0 %v791
  %1068 = vmatprep.subr.bf16.mxu0 %v795
  %1069 = vmatpush1.bf16.msra.mxu0 %v794
  %1070 = vmatprep.subr.bf16.mxu0 %v798
  %1071 = vmatpush1.bf16.msra.mxu0 %v797
  %1072 = vmatprep.subr.bf16.mxu0 %v801
  %1073 = vmatpush1.bf16.msra.mxu0 %v800
  %1074 = vmatprep.subr.bf16.mxu0 %v804
  %1075 = vmatpush1.bf16.msra.mxu0 %v803
  %1076 = vmatprep.subr.bf16.mxu0 %v807
  %1077 = vmatpush1.bf16.msra.mxu0 %v806
  %1078 = vmatprep.subr.bf16.mxu0 %v810
  %1079 = vmatpush1.bf16.msra.mxu0 %v809
  %1080 = vmatprep.subr.bf16.mxu0 %v813
  %1081 = vmatpush1.bf16.msra.mxu0 %v812
  %1082 = vmatprep.subr.bf16.mxu0 %v816
  %1083 = vmatpush1.bf16.msra.mxu0 %v815
  %1084 = vmatprep.subr.bf16.mxu0 %v819
  %1085 = vmatpush1.bf16.msra.mxu0 %v818
  %1086 = vmatprep.mubr.bf16.mxu0 %v236
  %1087 = vmatmul.mubr.bf16.gmra.mrb[0].mxu0 %v235
  %v1088 = vpop.f32.mrb[0].mxu0
  %v1089 = vadd.f32 %v1048, %v1088
  %v1090 = vpop.f32.mrb[0].mxu0
  %v1091 = vadd.f32 %v1050, %v1090
  %v1092 = vpop.f32.mrb[0].mxu0
  %v1093 = vpop.f32.mrb[0].mxu0
  %1094 = vdwg.mxu0
  %1095 = vmatprep.subr.bf16.mxu0 %v822
  %1096 = vmatpush1.bf16.msra.mxu0 %v821
  %1097 = vmatprep.subr.bf16.mxu0 %v825
  %1098 = vmatpush1.bf16.msra.mxu0 %v824
  %1099 = vmatprep.subr.bf16.mxu0 %v828
  %1100 = vmatpush1.bf16.msra.mxu0 %v827
  %1101 = vmatprep.subr.bf16.mxu0 %v831
  %1102 = vmatpush1.bf16.msra.mxu0 %v830
  %1103 = vmatprep.subr.bf16.mxu0 %v834
  %1104 = vmatpush1.bf16.msra.mxu0 %v833
  %1105 = vmatprep.subr.bf16.mxu0 %v837
  %1106 = vmatpush1.bf16.msra.mxu0 %v836
  %1107 = vmatprep.subr.bf16.mxu0 %v840
  %1108 = vmatpush1.bf16.msra.mxu0 %v839
  %1109 = vmatprep.subr.bf16.mxu0 %v843
  %1110 = vmatpush1.bf16.msra.mxu0 %v842
  %1111 = vmatprep.subr.bf16.mxu0 %v846
  %1112 = vmatpush1.bf16.msra.mxu0 %v845
  %1113 = vmatprep.subr.bf16.mxu0 %v849
  %1114 = vmatpush1.bf16.msra.mxu0 %v848
  %1115 = vmatprep.subr.bf16.mxu0 %v852
  %1116 = vmatpush1.bf16.msra.mxu0 %v851
  %1117 = vmatprep.subr.bf16.mxu0 %v855
  %1118 = vmatpush1.bf16.msra.mxu0 %v854
  %1119 = vmatprep.subr.bf16.mxu0 %v858
  %1120 = vmatpush1.bf16.msra.mxu0 %v857
  %1121 = vmatprep.subr.bf16.mxu0 %v861
  %1122 = vmatpush1.bf16.msra.mxu0 %v860
  %1123 = vmatprep.subr.bf16.mxu0 %v864
  %1124 = vmatpush1.bf16.msra.mxu0 %v863
  %1125 = vmatprep.subr.bf16.mxu0 %v867
  %1126 = vmatpush1.bf16.msra.mxu0 %v866
  %1127 = vmatprep.mubr.bf16.mxu0 %v238
  %1128 = vmatmul.mubr.bf16.gmra.mrb[0].mxu0 %v237
  %v1129 = vpop.f32.mrb[0].mxu0
  %v1130 = vadd.f32 %v1089, %v1129
  %v1131 = vpop.f32.mrb[0].mxu0
  %v1132 = vadd.f32 %v1091, %v1131
  %v1133 = vpop.f32.mrb[0].mxu0
  %v1134 = vpop.f32.mrb[0].mxu0
  %1135 = vdwg.mxu0
  %1136 = vmatprep.subr.bf16.mxu0 0
  %1137 = vmatpush1.bf16.msra.mxu0 %v727
  %1138 = vmatprep.subr.bf16.mxu0 0
  %1139 = vmatpush1.bf16.msra.mxu0 %v730
  %1140 = vmatprep.subr.bf16.mxu0 0
  %1141 = vmatpush1.bf16.msra.mxu0 %v733
  %1142 = vmatprep.subr.bf16.mxu0 0
  %1143 = vmatpush1.bf16.msra.mxu0 %v736
  %1144 = vmatprep.subr.bf16.mxu0 0
  %1145 = vmatpush1.bf16.msra.mxu0 %v739
  %1146 = vmatprep.subr.bf16.mxu0 0
  %1147 = vmatpush1.bf16.msra.mxu0 %v742
  %1148 = vmatprep.subr.bf16.mxu0 0
  %1149 = vmatpush1.bf16.msra.mxu0 %v745
  %1150 = vmatprep.subr.bf16.mxu0 0
  %1151 = vmatpush1.bf16.msra.mxu0 %v748
  %1152 = vmatprep.subr.bf16.mxu0 0
  %1153 = vmatpush1.bf16.msra.mxu0 %v751
  %1154 = vmatprep.subr.bf16.mxu0 0
  %1155 = vmatpush1.bf16.msra.mxu0 %v754
  %1156 = vmatprep.subr.bf16.mxu0 0
  %1157 = vmatpush1.bf16.msra.mxu0 %v757
  %1158 = vmatprep.subr.bf16.mxu0 0
  %1159 = vmatpush1.bf16.msra.mxu0 %v760
  %1160 = vmatprep.subr.bf16.mxu0 0
  %1161 = vmatpush1.bf16.msra.mxu0 %v763
  %1162 = vmatprep.subr.bf16.mxu0 0
  %1163 = vmatpush1.bf16.msra.mxu0 %v766
  %1164 = vmatprep.subr.bf16.mxu0 0
  %1165 = vmatpush1.bf16.msra.mxu0 %v769
  %1166 = vmatprep.subr.bf16.mxu0 0
  %1167 = vmatpush1.bf16.msra.mxu0 %v772
  %1168 = vmatprep.mubr.bf16.mxu0 %v234
  %1169 = vmatmul.mubr.bf16.gmra.mrb[0].mxu0 %v233
  %v1170 = vpop.f32.mrb[0].mxu0
  %v1171 = vadd.f32 %v223, %v1170
  %v1172 = vpop.f32.mrb[0].mxu0
  %v1173 = vpop.f32.mrb[0].mxu0
  %v1174 = vpop.f32.mrb[0].mxu0
  %1175 = vdwg.mxu0
  %1176 = vmatprep.subr.bf16.mxu0 0
  %1177 = vmatpush1.bf16.msra.mxu0 %v775
  %1178 = vmatprep.subr.bf16.mxu0 0
  %1179 = vmatpush1.bf16.msra.mxu0 %v778
  %1180 = vmatprep.subr.bf16.mxu0 0
  %1181 = vmatpush1.bf16.msra.mxu0 %v781
  %1182 = vmatprep.subr.bf16.mxu0 0
  %1183 = vmatpush1.bf16.msra.mxu0 %v784
  %1184 = vmatprep.subr.bf16.mxu0 0
  %1185 = vmatpush1.bf16.msra.mxu0 %v787
  %1186 = vmatprep.subr.bf16.mxu0 0
  %1187 = vmatpush1.bf16.msra.mxu0 %v790
  %1188 = vmatprep.subr.bf16.mxu0 0
  %1189 = vmatpush1.bf16.msra.mxu0 %v793
  %1190 = vmatprep.subr.bf16.mxu0 0
  %1191 = vmatpush1.bf16.msra.mxu0 %v796
  %1192 = vmatprep.subr.bf16.mxu0 0
  %1193 = vmatpush1.bf16.msra.mxu0 %v799
  %1194 = vmatprep.subr.bf16.mxu0 0
  %1195 = vmatpush1.bf16.msra.mxu0 %v802
  %1196 = vmatprep.subr.bf16.mxu0 0
  %1197 = vmatpush1.bf16.msra.mxu0 %v805
  %1198 = vmatprep.subr.bf16.mxu0 0
  %1199 = vmatpush1.bf16.msra.mxu0 %v808
  %1200 = vmatprep.subr.bf16.mxu0 0
  %1201 = vmatpush1.bf16.msra.mxu0 %v811
  %1202 = vmatprep.subr.bf16.mxu0 0
  %1203 = vmatpush1.bf16.msra.mxu0 %v814
  %1204 = vmatprep.subr.bf16.mxu0 0
  %1205 = vmatpush1.bf16.msra.mxu0 %v817
  %1206 = vmatprep.subr.bf16.mxu0 0
  %1207 = vmatpush1.bf16.msra.mxu0 %v820
  %1208 = vmatprep.mubr.bf16.mxu0 %v236
  %1209 = vmatmul.mubr.bf16.gmra.mrb[0].mxu0 %v235
  %v1210 = vpop.f32.mrb[0].mxu0
  %v1211 = vadd.f32 %v1171, %v1210
  %v1212 = vpop.f32.mrb[0].mxu0
  %v1213 = vpop.f32.mrb[0].mxu0
  %v1214 = vpop.f32.mrb[0].mxu0
  %1215 = vdwg.mxu0
  %1216 = vmatprep.subr.bf16.mxu0 0
  %1217 = vmatpush1.bf16.msra.mxu0 %v823
  %1218 = vmatprep.subr.bf16.mxu0 0
  %1219 = vmatpush1.bf16.msra.mxu0 %v826
  %1220 = vmatprep.subr.bf16.mxu0 0
  %1221 = vmatpush1.bf16.msra.mxu0 %v829
  %1222 = vmatprep.subr.bf16.mxu0 0
  %1223 = vmatpush1.bf16.msra.mxu0 %v832
  %1224 = vmatprep.subr.bf16.mxu0 0
  %1225 = vmatpush1.bf16.msra.mxu0 %v835
  %1226 = vmatprep.subr.bf16.mxu0 0
  %1227 = vmatpush1.bf16.msra.mxu0 %v838
  %1228 = vmatprep.subr.bf16.mxu0 0
  %1229 = vmatpush1.bf16.msra.mxu0 %v841
  %1230 = vmatprep.subr.bf16.mxu0 0
  %1231 = vmatpush1.bf16.msra.mxu0 %v844
  %1232 = vmatprep.subr.bf16.mxu0 0
  %1233 = vmatpush1.bf16.msra.mxu0 %v847
  %1234 = vmatprep.subr.bf16.mxu0 0
  %1235 = vmatpush1.bf16.msra.mxu0 %v850
  %1236 = vmatprep.subr.bf16.mxu0 0
  %1237 = vmatpush1.bf16.msra.mxu0 %v853
  %1238 = vmatprep.subr.bf16.mxu0 0
  %1239 = vmatpush1.bf16.msra.mxu0 %v856
  %1240 = vmatprep.subr.bf16.mxu0 0
  %1241 = vmatpush1.bf16.msra.mxu0 %v859
  %1242 = vmatprep.subr.bf16.mxu0 0
  %1243 = vmatpush1.bf16.msra.mxu0 %v862
  %1244 = vmatprep.subr.bf16.mxu0 0
  %1245 = vmatpush1.bf16.msra.mxu0 %v865
  %1246 = vmatprep.subr.bf16.mxu0 0
  %1247 = vmatpush1.bf16.msra.mxu0 %v868
  %1248 = vmatprep.mubr.bf16.mxu0 %v238
  %1249 = vmatmul.mubr.bf16.gmra.mrb[0].mxu0 %v237
  %v1250 = vpop.f32.mrb[0].mxu0
  %v1251 = vadd.f32 %v1211, %v1250
  %v1252 = vpop.f32.mrb[0].mxu0
  %v1253 = vpop.f32.mrb[0].mxu0
  %v1254 = vpop.f32.mrb[0].mxu0
  %1255 = vdwg.mxu0
  %1256 = vst [vmem:[%s3] sm:$0xff] %v1130
  %1257 = vst [vmem:[%s3 + $0x8] sm:$0xff] %v1132
  %1258 = vst [vmem:[%s3 + $0x10] sm:$0xff] %v1251
  // Predicated region
  $region14: #{vit_input_layer.1} parent=0 // pred_check
    _
  $region15: #{vit_input_layer.1} parent=0 // pred_check_branch
    %1260 = sbr.rel (0) target = $region17
  $region16: #{vit_input_layer.1} parent=0 // pred_region
    _
  $region17: #{vit_input_layer.1} parent=0 // pred_fallthru
    _
  // Predicated region
  $region18: #{vit_input_layer.1} parent=0 // pred_check
    _
  $region19: #{vit_input_layer.1} parent=0 // pred_check_branch
    %1262 = sbr.rel (0) target = $region21
  $region20: #{vit_input_layer.1} parent=0 // pred_region
    _
  $region21: #{vit_input_layer.1} parent=0 // pred_fallthru
    _

</llo_original>
